<compile_context>
chip_gen: v7x
topology: tpu7x:2x2x1
jax: 0.10.0
libtpu: 0.0.40
codegen_flags: <defaults>
</compile_context>

<pallas_src>
import jax
import jax.numpy as jnp
from jax.experimental import pallas as pl
from jax.experimental.pallas import tpu as pltpu


def qnn_kernel(x_ref, w1_ref, b1_ref, w2p_ref, b2p_ref, o_ref):
    x = x_ref[...]                                   # (TB, 4) f32
    # ---- Layer 1 (4 -> 128) on the VPU: unrolled broadcast mul-adds ----
    h = x[:, 0:1] * w1_ref[0:1, :]                   # (TB,1)*(1,128) -> (TB,128)
    h = h + x[:, 1:2] * w1_ref[1:2, :]
    h = h + x[:, 2:3] * w1_ref[2:3, :]
    h = h + x[:, 3:4] * w1_ref[3:4, :]
    h = h + b1_ref[...]                              # broadcast (1,128)
    # ---- LeakyReLU (PyTorch default negative_slope = 0.01) ----
    h = jnp.where(h > 0, h, 0.01 * h)
    # ---- Layer 2 (128 -> 128 padded) on the MXU, f32 accumulation ----
    out = jnp.dot(h, w2p_ref[...], preferred_element_type=jnp.float32)
    out = out + b2p_ref[...]                         # broadcast (1,128)
    o_ref[...] = out.astype(o_ref.dtype)             # lane-dense (TB,128) store


def q_nn_forward(x, w1, b1, w2, b2, *, tb_max=512):
    """x: [B,4] f32; w1: [4,128]; b1: [1,128] or [128]; w2: [128,5]; b2: [1,5] or [5]."""
    B, in_dim = x.shape
    hid = w1.shape[1]
    out_dim = w2.shape[1]
    b1 = jnp.reshape(b1, (1, hid)).astype(jnp.float32)
    b2 = jnp.reshape(b2, (1, out_dim)).astype(jnp.float32)

    # Zero-pad layer-2 params to a full 128-lane output (padded cols stay zero,
    # sliced away below, so they never leak downstream).
    pad_out = hid  # 128
    w2p = jnp.zeros((hid, pad_out), jnp.float32).at[:, :out_dim].set(w2)
    b2p = jnp.zeros((1, pad_out), jnp.float32).at[:, :out_dim].set(b2)

    # Batch tile: multiple of 8, capped at tb_max; pad batch to a tile multiple.
    b8 = max(8, ((B + 7) // 8) * 8)
    tb = min(tb_max, b8)
    bp = ((B + tb - 1) // tb) * tb
    xp = x if bp == B else jnp.pad(x, ((0, bp - B), (0, 0)))

    out = pl.pallas_call(
        qnn_kernel,
        out_shape=jax.ShapeDtypeStruct((bp, pad_out), jnp.float32),
        grid=(bp // tb,),
        in_specs=[
            pl.BlockSpec((tb, in_dim), lambda i: (i, 0)),      # streamed per tile
            pl.BlockSpec((in_dim, hid), lambda i: (0, 0)),     # VMEM-resident
            pl.BlockSpec((1, hid), lambda i: (0, 0)),          # VMEM-resident
            pl.BlockSpec((hid, pad_out), lambda i: (0, 0)),    # VMEM-resident
            pl.BlockSpec((1, pad_out), lambda i: (0, 0)),      # VMEM-resident
        ],
        out_specs=pl.BlockSpec((tb, pad_out), lambda i: (i, 0)),
        compiler_params=pltpu.CompilerParams(
            dimension_semantics=("parallel",),
        ),
    )(xp, w1, b1, w2p, b2p)

    # Drop batch padding and the zero-padded output lanes (pure XLA slice).
    return out[:B, :out_dim]


def init_params(key):
    """Deterministic synthetic init matching nn.Linear shapes (stored as [in, out])."""
    k1, k2, k3, k4 = jax.random.split(key, 4)
    in1, hid, out = 4, 128, 5
    lim1 = 1.0 / jnp.sqrt(jnp.float32(in1))
    lim2 = 1.0 / jnp.sqrt(jnp.float32(hid))
    w1 = jax.random.uniform(k1, (in1, hid), jnp.float32, -lim1, lim1)
    b1 = jax.random.uniform(k2, (1, hid), jnp.float32, -lim1, lim1)
    w2 = jax.random.uniform(k3, (hid, out), jnp.float32, -lim2, lim2)
    b2 = jax.random.uniform(k4, (1, out), jnp.float32, -lim2, lim2)
    return w1, b1, w2, b2


def reference_forward(x, w1, b1, w2, b2):
    h = x @ w1 + b1
    h = jnp.where(h > 0, h, 0.01 * h)
    return h @ w2 + b2


if __name__ == "__main__":
    key = jax.random.PRNGKey(0)
    kx, kx2, kp = jax.random.split(key, 3)
    w1, b1, w2, b2 = init_params(kp)

    # Small RL-style batch (single tile).
    B = 8
    x = jax.random.normal(kx, (B, 4), dtype=jnp.float32)
    out = q_nn_forward(x, w1, b1, w2, b2)
    jax.block_until_ready(out)
    ref = reference_forward(x, w1, b1, w2, b2)
    assert out.shape == (B, 5)
    assert jnp.allclose(out, ref, atol=1e-5, rtol=1e-5)

    # Multi-tile batch (exercises grid + batch padding path).
    B2 = 600
    x2 = jax.random.normal(kx2, (B2, 4), dtype=jnp.float32)
    out2 = q_nn_forward(x2, w1, b1, w2, b2)
    jax.block_until_ready(out2)
    ref2 = reference_forward(x2, w1, b1, w2, b2)
    assert out2.shape == (B2, 5)
    assert jnp.allclose(out2, ref2, atol=1e-5, rtol=1e-5)

    print("KERNEL_OK")
</pallas_src>

<mosaic_0001>
module attributes {stable_mosaic.version = 11 : i64} {
  func.func @qnn_kernel(%arg0: i32, %arg1: memref<8x4xf32, #tpu.memory_space<vmem>>, %arg2: memref<4x128xf32, #tpu.memory_space<vmem>>, %arg3: memref<1x128xf32, #tpu.memory_space<vmem>>, %arg4: memref<128x128xf32, #tpu.memory_space<vmem>>, %arg5: memref<1x128xf32, #tpu.memory_space<vmem>>, %arg6: memref<8x128xf32, #tpu.memory_space<vmem>>) attributes {dimension_semantics = [#tpu.dimension_semantics<parallel>], iteration_bounds = array<i64: 1>, scalar_prefetch = 0 : i64, scratch_operands = 0 : i64, tpu.core_type = #tpu.core_type<tc>, window_params = [{transform_indices = @transform_0, window_bounds = array<i64: 8, 4>}, {pipeline_mode = #tpu.pipeline_mode<synchronous>, transform_indices = @transform_1, window_bounds = array<i64: 4, 128>}, {pipeline_mode = #tpu.pipeline_mode<synchronous>, transform_indices = @transform_2, window_bounds = array<i64: 1, 128>}, {pipeline_mode = #tpu.pipeline_mode<synchronous>, transform_indices = @transform_3, window_bounds = array<i64: 128, 128>}, {pipeline_mode = #tpu.pipeline_mode<synchronous>, transform_indices = @transform_4, window_bounds = array<i64: 1, 128>}, {transform_indices = @transform_5, window_bounds = array<i64: 8, 128>}]} {
    %c0 = arith.constant 0 : index
    %c0_0 = arith.constant 0 : index
    %0 = vector.load %arg1[%c0, %c0_0] : memref<8x4xf32, #tpu.memory_space<vmem>>, vector<8x4xf32>
    %1 = vector.extract_strided_slice %0 {offsets = [0, 0], sizes = [8, 1], strides = [1, 1]} : vector<8x4xf32> to vector<8x1xf32>
    %c0_1 = arith.constant 0 : index
    %c0_2 = arith.constant 0 : index
    %2 = vector.load %arg2[%c0_1, %c0_2] : memref<4x128xf32, #tpu.memory_space<vmem>>, vector<1x128xf32>
    %3 = vector.broadcast %1 : vector<8x1xf32> to vector<8x128xf32>
    %4 = vector.broadcast %2 : vector<1x128xf32> to vector<8x128xf32>
    %5 = arith.mulf %3, %4 : vector<8x128xf32>
    %6 = vector.extract_strided_slice %0 {offsets = [0, 1], sizes = [8, 1], strides = [1, 1]} : vector<8x4xf32> to vector<8x1xf32>
    %c1 = arith.constant 1 : index
    %c0_3 = arith.constant 0 : index
    %7 = vector.load %arg2[%c1, %c0_3] : memref<4x128xf32, #tpu.memory_space<vmem>>, vector<1x128xf32>
    %8 = vector.broadcast %6 : vector<8x1xf32> to vector<8x128xf32>
    %9 = vector.broadcast %7 : vector<1x128xf32> to vector<8x128xf32>
    %10 = arith.mulf %8, %9 : vector<8x128xf32>
    %11 = arith.addf %5, %10 : vector<8x128xf32>
    %12 = vector.extract_strided_slice %0 {offsets = [0, 2], sizes = [8, 1], strides = [1, 1]} : vector<8x4xf32> to vector<8x1xf32>
    %c2 = arith.constant 2 : index
    %c0_4 = arith.constant 0 : index
    %13 = vector.load %arg2[%c2, %c0_4] : memref<4x128xf32, #tpu.memory_space<vmem>>, vector<1x128xf32>
    %14 = vector.broadcast %12 : vector<8x1xf32> to vector<8x128xf32>
    %15 = vector.broadcast %13 : vector<1x128xf32> to vector<8x128xf32>
    %16 = arith.mulf %14, %15 : vector<8x128xf32>
    %17 = arith.addf %11, %16 : vector<8x128xf32>
    %18 = vector.extract_strided_slice %0 {offsets = [0, 3], sizes = [8, 1], strides = [1, 1]} : vector<8x4xf32> to vector<8x1xf32>
    %c3 = arith.constant 3 : index
    %c0_5 = arith.constant 0 : index
    %19 = vector.load %arg2[%c3, %c0_5] : memref<4x128xf32, #tpu.memory_space<vmem>>, vector<1x128xf32>
    %20 = vector.broadcast %18 : vector<8x1xf32> to vector<8x128xf32>
    %21 = vector.broadcast %19 : vector<1x128xf32> to vector<8x128xf32>
    %22 = arith.mulf %20, %21 : vector<8x128xf32>
    %23 = arith.addf %17, %22 : vector<8x128xf32>
    %c0_6 = arith.constant 0 : index
    %c0_7 = arith.constant 0 : index
    %24 = vector.load %arg3[%c0_6, %c0_7] : memref<1x128xf32, #tpu.memory_space<vmem>>, vector<1x128xf32>
    %25 = vector.broadcast %24 : vector<1x128xf32> to vector<8x128xf32>
    %26 = arith.addf %23, %25 : vector<8x128xf32>
    %cst = arith.constant 0.000000e+00 : f32
    %27 = vector.broadcast %cst : f32 to vector<8x128xf32>
    %28 = arith.cmpf ogt, %26, %27 : vector<8x128xf32>
    %cst_8 = arith.constant 0.00999999977 : f32
    %29 = vector.broadcast %cst_8 : f32 to vector<8x128xf32>
    %30 = arith.mulf %29, %26 : vector<8x128xf32>
    %31 = arith.select %28, %26, %30 : vector<8x128xi1>, vector<8x128xf32>
    %c0_9 = arith.constant 0 : index
    %c0_10 = arith.constant 0 : index
    %32 = vector.load %arg4[%c0_9, %c0_10] : memref<128x128xf32, #tpu.memory_space<vmem>>, vector<128x128xf32>
    %cst_11 = arith.constant dense<0.000000e+00> : vector<8x128xf32>
    %33 = tpu.matmul %31, %32, %cst_11 {dimension_numbers = #tpu.dot_dimension_numbers<[1], [0], [0], [1], [0, 0, 1, 1], [], []>} : vector<8x128xf32>, vector<128x128xf32>, vector<8x128xf32> -> vector<8x128xf32>
    %c0_12 = arith.constant 0 : index
    %c0_13 = arith.constant 0 : index
    %34 = vector.load %arg5[%c0_12, %c0_13] : memref<1x128xf32, #tpu.memory_space<vmem>>, vector<1x128xf32>
    %35 = vector.broadcast %34 : vector<1x128xf32> to vector<8x128xf32>
    %36 = arith.addf %33, %35 : vector<8x128xf32>
    %c0_14 = arith.constant 0 : index
    %c0_15 = arith.constant 0 : index
    %37 = vector.load %arg6[%c0_14, %c0_15] : memref<8x128xf32, #tpu.memory_space<vmem>>, vector<8x128xf32>
    tpu.vector_store %arg6[%c0_14, %c0_15], %36 {strides = array<i32>} : memref<8x128xf32, #tpu.memory_space<vmem>>, vector<8x128xf32>,
    return
  }
  func.func @transform_0(%arg0: i32) -> (i32, i32) {
    %c0_i32 = arith.constant 0 : i32
    %c0_i32_0 = arith.constant 0 : i32
    return %arg0, %c0_i32 : i32, i32
  }
  func.func @transform_1(%arg0: i32) -> (i32, i32) {
    %c0_i32 = arith.constant 0 : i32
    %c0_i32_0 = arith.constant 0 : i32
    %c0_i32_1 = arith.constant 0 : i32
    return %c0_i32, %c0_i32_0 : i32, i32
  }
  func.func @transform_2(%arg0: i32) -> (i32, i32) {
    %c0_i32 = arith.constant 0 : i32
    %c0_i32_0 = arith.constant 0 : i32
    %c0_i32_1 = arith.constant 0 : i32
    return %c0_i32, %c0_i32_0 : i32, i32
  }
  func.func @transform_3(%arg0: i32) -> (i32, i32) {
    %c0_i32 = arith.constant 0 : i32
    %c0_i32_0 = arith.constant 0 : i32
    %c0_i32_1 = arith.constant 0 : i32
    return %c0_i32, %c0_i32_0 : i32, i32
  }
  func.func @transform_4(%arg0: i32) -> (i32, i32) {
    %c0_i32 = arith.constant 0 : i32
    %c0_i32_0 = arith.constant 0 : i32
    %c0_i32_1 = arith.constant 0 : i32
    return %c0_i32, %c0_i32_0 : i32, i32
  }
  func.func @transform_5(%arg0: i32) -> (i32, i32) {
    %c0_i32 = arith.constant 0 : i32
    %c0_i32_0 = arith.constant 0 : i32
    return %arg0, %c0_i32 : i32, i32
  }
}

</mosaic_0001>

<llo_original>
// kernel: tpu_custom_call.1
$region0: #{tpu_custom_call.1}
  #allocation0 [shape = 'u32[]', space=smem, size = 0x4, offset = 0x4, fixed_abs, tag = 'smem constant byte address 0x4 - core index']
  #allocation1 [shape = 'u32[144,128]{1,0:T(1,128)}', space=vmem, size = 0x12000, scoped, tag = 'internal scratch']
  %s0 = inlined_call_operand.vmem [shape: f32[8,4], index: 0, kind: input, shape index: {}]
  %s1 = inlined_call_operand.vmem [shape: f32[4,128], index: 1, kind: input, shape index: {}]
  %s2 = inlined_call_operand.vmem [shape: f32[1,128], index: 2, kind: input, shape index: {}]
  %s3 = inlined_call_operand.hbm [shape: f32[128,128], index: 3, kind: input, shape index: {}]
  %s4 = inlined_call_operand.vmem [shape: f32[1,128], index: 4, kind: input, shape index: {}]
  %s5 = inlined_call_operand.hbm [shape: f32[8,128], index: 5, kind: output, shape index: {}]
  %s6 = sld [smem:[#allocation0]]
  $region34: #{tpu_custom_call.1} parent=0
    _
  %s8 = ssub.s32 1, %s6
  %s9 = scalar_select 0, %s8, %s6
  $region1: #{tpu_custom_call.1} parent=0
    #allocation2 [shape = 'u8[65536]{0}', space=vmem, size = 0x10000, scoped, tag = 'input window, operand 3, single buffered']
    #allocation3 [shape = 's32[1]{0}', space=sflag, size = 0x4, scoped, tag = 'scoped memory for tpu_custom_call.1']
    #allocation4 [shape = 's32[1]{0}', space=sflag, size = 0x4, scoped, tag = 'scoped memory for tpu_custom_call.1']
    #allocation5 [shape = 'u8[4096]{0}', space=vmem, size = 0x1000, scoped, tag = 'output window, operand 0, single buffered']
    %10 = vsyncpa [#allocation3], 0
    %11 = vsyncpa [#allocation4], 0
    // Predicated region
    $region2: #{tpu_custom_call.1} parent=1 // pred_check
      _
    $region3: #{tpu_custom_call.1} parent=1 // pred_check_branch
      %13 = sbr.rel (0) target = $region5
    $region4: #{tpu_custom_call.1} parent=1 // pred_region
      _
    $region5: #{tpu_custom_call.1} parent=1 // pred_fallthru
      _
    // Predicated region
    $region6: #{tpu_custom_call.1} parent=1 // pred_check
      _
    $region7: #{tpu_custom_call.1} parent=1 // pred_check_branch
      %15 = sbr.rel (0) target = $region9
    $region8: #{tpu_custom_call.1} parent=1 // pred_region
      _
    $region9: #{tpu_custom_call.1} parent=1 // pred_fallthru
      _
    // Predicated region
    $region10: #{tpu_custom_call.1} parent=1 // pred_check
      _
    $region11: #{tpu_custom_call.1} parent=1 // pred_check_branch
      %17 = sbr.rel (0) target = $region13
    $region12: #{tpu_custom_call.1} parent=1 // pred_region
      _
    $region13: #{tpu_custom_call.1} parent=1 // pred_fallthru
      _
    // Predicated region
    $region14: #{tpu_custom_call.1} parent=1 // pred_check
      _
    $region15: #{tpu_custom_call.1} parent=1 // pred_check_branch
      %19 = sbr.rel (0) target = $region17
    $region16: #{tpu_custom_call.1} parent=1 // pred_region
      %s21 = ssub.s32 2048, 2048
      %22 = vsyncadd [#allocation3], %s21
      %s23 = sshll.u32 [#allocation2], 4
      %s24 = int_to_ptr.vmem [resolvable:$true] %s23
      %29 = dma.hbm_to_vmem [thread:$0]  %s3, 2048, %s24, [#allocation3], 128, 128, 8
    $region17: #{tpu_custom_call.1} parent=1 // pred_fallthru
      _
    // Predicated region
    $region18: #{tpu_custom_call.1} parent=1 // pred_check
      _
    $region19: #{tpu_custom_call.1} parent=1 // pred_check_branch
      %31 = sbr.rel (0) target = $region21
    $region20: #{tpu_custom_call.1} parent=1 // pred_region
      _
    $region21: #{tpu_custom_call.1} parent=1 // pred_fallthru
      _
    // Predicated region
    $region22: #{tpu_custom_call.1} parent=1 // pred_check
      _
    $region23: #{tpu_custom_call.1} parent=1 // pred_check_branch
      %33 = sbr.rel (0) target = $region25
    $region24: #{tpu_custom_call.1} parent=1 // pred_region
      %34 = dma.done [#allocation3], 2048
    $region25: #{tpu_custom_call.1} parent=1 // pred_fallthru
      _
    %v35 = vld [vmem:[%s0] sm:$0xff]
    %v36 = vld [vmem:[%s1] sm:$0x1]
    %38 = vset.pattern.permute.xlu0 0
    %39 = vperm.xlu0 %38, %v35
    %v40 = vpop.permute.xlu0 %39
    %v42 = vlaneseq
    %v43 = vshrl.u32 %v42, 7
    %v44 = vsub.s32 0, %v43
    %v45 = vrot.slane %v36, %v44
    %v46 = vmul.f32 %v40, %v45
    %v47 = vld [vmem:[%s1 + $0x1] sm:$0x1]
    %48 = vset.pattern.permute.xlu0 1
    %49 = vperm.xlu0 %48, %v35
    %v50 = vpop.permute.xlu0 %49
    %v52 = vlaneseq
    %v53 = vshrl.u32 %v52, 7
    %v54 = vsub.s32 0, %v53
    %v55 = vrot.slane %v47, %v54
    %v56 = vmul.f32 %v50, %v55
    %v57 = vadd.f32 %v46, %v56
    %v58 = vld [vmem:[%s1 + $0x2] sm:$0x1]
    %59 = vset.pattern.permute.xlu0 2
    %60 = vperm.xlu0 %59, %v35
    %v61 = vpop.permute.xlu0 %60
    %v63 = vlaneseq
    %v64 = vshrl.u32 %v63, 7
    %v65 = vsub.s32 0, %v64
    %v66 = vrot.slane %v58, %v65
    %v67 = vmul.f32 %v61, %v66
    %v68 = vadd.f32 %v57, %v67
    %v69 = vld [vmem:[%s1 + $0x3] sm:$0x1]
    %70 = vset.pattern.permute.xlu0 3
    %71 = vperm.xlu0 %70, %v35
    %v72 = vpop.permute.xlu0 %71
    %v74 = vlaneseq
    %v75 = vshrl.u32 %v74, 7
    %v76 = vsub.s32 0, %v75
    %v77 = vrot.slane %v69, %v76
    %v78 = vmul.f32 %v72, %v77
    %v79 = vadd.f32 %v68, %v78
    %v80 = vld [vmem:[%s2] sm:$0x1]
    %v82 = vlaneseq
    %v83 = vshrl.u32 %v82, 7
    %v84 = vsub.s32 0, %v83
    %v85 = vrot.slane %v80, %v84
    %v87 = vadd.f32 %v79, %v85
    %vm88 = vcmp.gt.f32.partialorder %v87, 0.0
    %v89 = vmul.f32 %v87, 0.01
    %v90 = vsel %vm88, %v87, %v89
    %v91 = vld [vmem:[#allocation2] sm:$0xff]
    %v92 = vld [vmem:[#allocation2 + $0x8] sm:$0xff]
    %v93 = vld [vmem:[#allocation2 + $0x10] sm:$0xff]
    %v94 = vld [vmem:[#allocation2 + $0x18] sm:$0xff]
    %v95 = vld [vmem:[#allocation2 + $0x20] sm:$0xff]
    %v96 = vld [vmem:[#allocation2 + $0x28] sm:$0xff]
    %v97 = vld [vmem:[#allocation2 + $0x30] sm:$0xff]
    %v98 = vld [vmem:[#allocation2 + $0x38] sm:$0xff]
    %v99 = vld [vmem:[#allocation2 + $0x40] sm:$0xff]
    %v100 = vld [vmem:[#allocation2 + $0x48] sm:$0xff]
    %v101 = vld [vmem:[#allocation2 + $0x50] sm:$0xff]
    %v102 = vld [vmem:[#allocation2 + $0x58] sm:$0xff]
    %v103 = vld [vmem:[#allocation2 + $0x60] sm:$0xff]
    %v104 = vld [vmem:[#allocation2 + $0x68] sm:$0xff]
    %v105 = vld [vmem:[#allocation2 + $0x70] sm:$0xff]
    %v106 = vld [vmem:[#allocation2 + $0x78] sm:$0xff]
    %v107 = vld [vmem:[%s4] sm:$0x1]
    %v109 = vlaneseq
    %v110 = vshrl.u32 %v109, 7
    %v111 = vsub.s32 0, %v110
    %v112 = vrot.slane %v107, %v111
    %114 = vmatprep.subr.mxu0 0.0
    %115 = vmatpush1.msra.mxu0 %v91
    %116 = vmatprep.subr.mxu0 0.0
    %117 = vmatpush1.msra.mxu0 %v92
    %118 = vmatprep.subr.mxu0 0.0
    %119 = vmatpush1.msra.mxu0 %v93
    %120 = vmatprep.subr.mxu0 0.0
    %121 = vmatpush1.msra.mxu0 %v94
    %122 = vmatprep.subr.mxu0 0.0
    %123 = vmatpush1.msra.mxu0 %v95
    %124 = vmatprep.subr.mxu0 0.0
    %125 = vmatpush1.msra.mxu0 %v96
    %126 = vmatprep.subr.mxu0 0.0
    %127 = vmatpush1.msra.mxu0 %v97
    %128 = vmatprep.subr.mxu0 0.0
    %129 = vmatpush1.msra.mxu0 %v98
    %130 = vmatprep.subr.mxu0 0.0
    %131 = vmatpush1.msra.mxu0 %v99
    %132 = vmatprep.subr.mxu0 0.0
    %133 = vmatpush1.msra.mxu0 %v100
    %134 = vmatprep.subr.mxu0 0.0
    %135 = vmatpush1.msra.mxu0 %v101
    %136 = vmatprep.subr.mxu0 0.0
    %137 = vmatpush1.msra.mxu0 %v102
    %138 = vmatprep.subr.mxu0 0.0
    %139 = vmatpush1.msra.mxu0 %v103
    %140 = vmatprep.subr.mxu0 0.0
    %141 = vmatpush1.msra.mxu0 %v104
    %142 = vmatprep.subr.mxu0 0.0
    %143 = vmatpush1.msra.mxu0 %v105
    %144 = vmatprep.subr.mxu0 0.0
    %145 = vmatpush1.msra.mxu0 %v106
    %146 = vmatprep.subr.mxu0 0.0
    %147 = vmatpush1.msra.mxu0 0.0
    %148 = vmatprep.subr.mxu0 0.0
    %149 = vmatpush1.msra.mxu0 0.0
    %150 = vmatprep.subr.mxu0 0.0
    %151 = vmatpush1.msra.mxu0 0.0
    %152 = vmatprep.subr.mxu0 0.0
    %153 = vmatpush1.msra.mxu0 0.0
    %154 = vmatprep.subr.mxu0 0.0
    %155 = vmatpush1.msra.mxu0 0.0
    %156 = vmatprep.subr.mxu0 0.0
    %157 = vmatpush1.msra.mxu0 0.0
    %158 = vmatprep.subr.mxu0 0.0
    %159 = vmatpush1.msra.mxu0 0.0
    %160 = vmatprep.subr.mxu0 0.0
    %161 = vmatpush1.msra.mxu0 0.0
    %162 = vmatprep.subr.mxu0 0.0
    %163 = vmatpush1.msra.mxu0 0.0
    %164 = vmatprep.subr.mxu0 0.0
    %165 = vmatpush1.msra.mxu0 0.0
    %166 = vmatprep.subr.mxu0 0.0
    %167 = vmatpush1.msra.mxu0 0.0
    %168 = vmatprep.subr.mxu0 0.0
    %169 = vmatpush1.msra.mxu0 0.0
    %170 = vmatprep.subr.mxu0 0.0
    %171 = vmatpush1.msra.mxu0 0.0
    %172 = vmatprep.subr.mxu0 0.0
    %173 = vmatpush1.msra.mxu0 0.0
    %174 = vmatprep.subr.mxu0 0.0
    %175 = vmatpush1.msra.mxu0 0.0
    %176 = vmatprep.subr.mxu0 0.0
    %177 = vmatpush1.msra.mxu0 0.0
    %178 = vmatprep.mubr.f32.mxu0 0.0
    %179 = vmatmul.mubr.f32.gmra.mrb[0].mxu0 %v90
    %v180 = vpop.f32.mrb[0].mxu0
    %v181 = vadd.f32 %v112, %v180
    %v182 = vpop.f32.mrb[0].mxu0
    %183 = vdwg.mxu0
    %184 = vst [vmem:[#allocation5] sm:$0xff] %v181
    // Predicated region
    $region26: #{tpu_custom_call.1} parent=1 // pred_check
      _
    $region27: #{tpu_custom_call.1} parent=1 // pred_check_branch
      %186 = sbr.rel (0) target = $region29
    $region28: #{tpu_custom_call.1} parent=1 // pred_region
      %s188 = ssub.s32 128, 128
      %189 = vsyncadd [#allocation4], %s188
      %s191 = sshll.u32 [#allocation5], 4
      %s192 = int_to_ptr.vmem [resolvable:$true] %s191
      %194 = dma.vmem_to_hbm [thread:$0]  %s192, 128, %s5, [#allocation4]
    $region29: #{tpu_custom_call.1} parent=1 // pred_fallthru
      _
    // Predicated region
    $region30: #{tpu_custom_call.1} parent=1 // pred_check
      _
    $region31: #{tpu_custom_call.1} parent=1 // pred_check_branch
      %196 = sbr.rel (0) target = $region33
    $region32: #{tpu_custom_call.1} parent=1 // pred_region
      %197 = dma.done [#allocation4], 128
    $region33: #{tpu_custom_call.1} parent=1 // pred_fallthru
      _
    %198 = vsyncpa [#allocation3], 1
    %199 = vsyncpa [#allocation4], 1

</llo_original>
